<compile_context>
chip_gen: v5e
topology: v5e:2x2
jax: 0.10.0
libtpu: 0.0.40
codegen_flags: <defaults>
</compile_context>

<pallas_src>
import jax
import jax.numpy as jnp
from jax.experimental import pallas as pl
from jax.experimental.pallas import tpu as pltpu


def _round_up(x, m):
    return ((x + m - 1) // m) * m


# ---------------------------------------------------------------------------
# Init-time glue: build the dense radon projection operator.
# Reproduces torch.nn.functional.affine_grid(align_corners=False) +
# grid_sample(mode='bilinear', padding_mode='zeros', align_corners=False) + sum over H.
# ---------------------------------------------------------------------------
def _build_projection_matrix(theta, H, W, dtype=jnp.float32):
    """Returns P of shape (T*W, H*W): out[t*W+j] = sum_{h,w} P[t*W+j, h*W+w] * img[h,w]."""
    T = theta.shape[0]
    ts = jnp.sin(theta)
    tc = jnp.cos(theta)

    # affine_grid base coordinates (align_corners=False)
    j = jnp.arange(W, dtype=jnp.float32)
    i = jnp.arange(H, dtype=jnp.float32)
    xn = (2.0 * j + 1.0) / W - 1.0          # (W,)
    yn = (2.0 * i + 1.0) / H - 1.0          # (H,)

    # rotation grid: (T, H_out, W_out)
    gx = tc[:, None, None] * xn[None, None, :] - ts[:, None, None] * yn[None, :, None]
    gy = ts[:, None, None] * xn[None, None, :] + tc[:, None, None] * yn[None, :, None]

    # grid_sample unnormalization (align_corners=False)
    ix = ((gx + 1.0) * W - 1.0) * 0.5
    iy = ((gy + 1.0) * H - 1.0) * 0.5

    x0 = jnp.floor(ix)
    y0 = jnp.floor(iy)
    wx1 = ix - x0
    wx0 = 1.0 - wx1
    wy1 = iy - y0
    wy0 = 1.0 - wy1

    P = jnp.zeros((T, W, H * W), dtype)
    t_idx = jnp.broadcast_to(jnp.arange(T)[:, None, None], (T, H, W))
    j_idx = jnp.broadcast_to(jnp.arange(W)[None, None, :], (T, H, W))

    corners = [
        (y0,       x0,       wy0 * wx0),
        (y0,       x0 + 1.0, wy0 * wx1),
        (y0 + 1.0, x0,       wy1 * wx0),
        (y0 + 1.0, x0 + 1.0, wy1 * wx1),
    ]
    for yc, xc, wgt in corners:
        valid = (xc >= 0) & (xc < W) & (yc >= 0) & (yc < H)   # zeros padding
        lin = (jnp.clip(yc, 0, H - 1) * W + jnp.clip(xc, 0, W - 1)).astype(jnp.int32)
        w = jnp.where(valid, wgt, 0.0).astype(dtype)
        # scatter-add: accumulates the sum over the output-row index i automatically
        P = P.at[t_idx, j_idx, lin].add(w)

    return P.reshape(T * W, H * W)


# ---------------------------------------------------------------------------
# Pallas kernel: out tile IS the f32 accumulator (block index constant across k).
# Grid = (N tiles [parallel], K tiles [arbitrary / reduction]).
# ---------------------------------------------------------------------------
def _radon_matmul_kernel(a_ref, b_ref, o_ref):
    @pl.when(pl.program_id(1) == 0)
    def _():
        o_ref[...] = jnp.zeros_like(o_ref)

    o_ref[...] += jnp.dot(a_ref[...], b_ref[...],
                          preferred_element_type=jnp.float32)


def _make_radon_matmul(Mp, Kp, Np, tk, tn, operand_bytes=2):
    """pallas_call computing (Mp, Kp) @ (Kp, Np) -> (Mp, Np) f32.

    The RHS is passed pre-tiled as (Kp//tk, Np//tn, tk, tn) so every grid step
    DMAs one fully contiguous block.
    """
    Kt, Nt = Kp // tk, Np // tn

    cost = pl.CostEstimate(
        flops=2 * Mp * Kp * Np,
        transcendentals=0,
        bytes_accessed=(Kp * Np * operand_bytes          # P stream (dominant)
                        + Nt * Mp * Kp * operand_bytes   # image re-streamed per N tile
                        + Mp * Np * 4),                  # f32 output
    )

    # Double-buffered A and P tiles + the (revisited) output tile; 2x margin,
    # capped so it stays inside v7x's 64 MiB physical VMEM.
    need = 2 * Mp * tk * operand_bytes + 2 * tk * tn * operand_bytes + 2 * Mp * tn * 4
    vmem_limit = int(min(max(2 * need, 32 * 1024 * 1024), 56 * 1024 * 1024))

    return pl.pallas_call(
        _radon_matmul_kernel,
        out_shape=jax.ShapeDtypeStruct((Mp, Np), jnp.float32),
        grid_spec=pltpu.PrefetchScalarGridSpec(
            num_scalar_prefetch=0,
            grid=(Nt, Kt),
            in_specs=[
                # Image: skinny (Mp, tk) tiles streamed along K (<1% of P bytes).
                pl.BlockSpec((Mp, tk), lambda n, k: (0, k)),
                # Projection operator: one contiguous pre-tiled (tk, tn) block per step.
                pl.BlockSpec((None, None, tk, tn), lambda n, k: (k, n, 0, 0)),
            ],
            out_specs=pl.BlockSpec((Mp, tn), lambda n, k: (0, n)),
        ),
        compiler_params=pltpu.CompilerParams(
            dimension_semantics=("parallel", "arbitrary"),
            vmem_limit_bytes=vmem_limit,
        ),
        cost_estimate=cost,
    )


# ---------------------------------------------------------------------------
# Module equivalent: closure that precomputes buffers (like __init__) and
# returns the forward pass.
# ---------------------------------------------------------------------------
def make_fast_radon_transform(image_size, theta_deg=None, *,
                              operand_dtype=jnp.bfloat16,
                              preferred_tile_k=1024, preferred_tile_n=2048):
    B, C, H, W = image_size
    assert H == W
    assert B == 1           # torch .expand() in the reference module implies B == 1
    if theta_deg is None:
        theta_deg = jnp.arange(180.0, dtype=jnp.float32)
    theta = jnp.deg2rad(jnp.asarray(theta_deg, jnp.float32))
    T = int(theta.shape[0])

    M = B * C
    K = H * W
    N = T * W

    # Tile / padding geometry (MXU / lane / bf16-sublane aligned).
    Mp = _round_up(max(M, 16), 16)                 # bf16 packs 16 rows per vreg
    tk = min(preferred_tile_k, _round_up(K, 128))
    tn = min(preferred_tile_n, _round_up(N, 128))

    # v7x megacore: nudge the number of N tiles even so the "parallel" axis splits
    # evenly across both TensorCores.
    Np = _round_up(N, tn)
    if Np // tn > 1 and (Np // tn) % 2 == 1 and tn >= 256:
        tn_half = _round_up(tn // 2, 128)
        if tn_half < tn and (_round_up(N, tn_half) // tn_half) % 2 == 0:
            tn = tn_half
    Np = _round_up(N, tn)
    Kp = _round_up(K, tk)

    # "register_buffer('grid', ...)" equivalent: precomputed linear operator.
    # Built in f32 for accuracy, then padded + cast + pre-tiled ONCE at init.
    P = _build_projection_matrix(theta, H, W)                              # (N, K) f32
    P_T = jnp.pad(P.T, ((0, Kp - K), (0, Np - N))).astype(operand_dtype)   # (Kp, Np)
    P_blocks = P_T.reshape(Kp // tk, tk, Np // tn, tn).transpose(0, 2, 1, 3)
    P_blocks = jax.device_put(P_blocks)                                    # (Kt, Nt, tk, tn)

    matmul = _make_radon_matmul(Mp, Kp, Np, tk, tn,
                                operand_bytes=jnp.dtype(operand_dtype).itemsize)

    @jax.jit
    def forward(image):
        assert image.shape == (B, C, H, W)
        img_flat = image.reshape(M, K).astype(operand_dtype)        # (C, H*W) bf16
        a = jnp.pad(img_flat, ((0, Mp - M), (0, Kp - K)))           # (Mp, Kp)
        out = matmul(a, P_blocks)                                   # (Mp, Np) f32
        radon = out[:M, :N].reshape(C, T, W)[None]                  # (1, C, T, W)
        return radon

    return forward


# ---------------------------------------------------------------------------
# Pure-JAX reference (direct bilinear gather), for correctness checking only.
# ---------------------------------------------------------------------------
def _reference_radon(image, theta):
    B, C, H, W = image.shape
    ts = jnp.sin(theta)
    tc = jnp.cos(theta)
    j = jnp.arange(W, dtype=jnp.float32)
    i = jnp.arange(H, dtype=jnp.float32)
    xn = (2.0 * j + 1.0) / W - 1.0
    yn = (2.0 * i + 1.0) / H - 1.0
    gx = tc[:, None, None] * xn[None, None, :] - ts[:, None, None] * yn[None, :, None]
    gy = ts[:, None, None] * xn[None, None, :] + tc[:, None, None] * yn[None, :, None]
    ix = ((gx + 1.0) * W - 1.0) * 0.5
    iy = ((gy + 1.0) * H - 1.0) * 0.5
    x0 = jnp.floor(ix)
    y0 = jnp.floor(iy)
    wx1, wx0 = ix - x0, 1.0 - (ix - x0)
    wy1, wy0 = iy - y0, 1.0 - (iy - y0)
    img = image[0]  # (C, H, W)

    def sample(yc, xc, w):
        valid = (xc >= 0) & (xc < W) & (yc >= 0) & (yc < H)
        xi = jnp.clip(xc, 0, W - 1).astype(jnp.int32)
        yi = jnp.clip(yc, 0, H - 1).astype(jnp.int32)
        vals = img[:, yi, xi]                         # (C, T, H, W)
        return jnp.where(valid, w, 0.0)[None] * vals

    s = (sample(y0, x0, wy0 * wx0) + sample(y0, x0 + 1, wy0 * wx1)
         + sample(y0 + 1, x0, wy1 * wx0) + sample(y0 + 1, x0 + 1, wy1 * wx1))
    return s.sum(axis=2)[None]                        # (1, C, T, W)


if __name__ == "__main__":
    key = jax.random.PRNGKey(0)
    B, C, H, W = 1, 4, 16, 16
    T = 8
    theta_deg = jnp.arange(T, dtype=jnp.float32) * (180.0 / T)

    image = jax.random.normal(key, (B, C, H, W), dtype=jnp.float32)

    radon_fwd = make_fast_radon_transform((B, C, H, W), theta_deg)
    out = jax.block_until_ready(radon_fwd(image))

    assert out.shape == (B, C, T, W), out.shape
    ref = _reference_radon(image, jnp.deg2rad(theta_deg))

    # bf16 operand storage => loosen tolerance vs the f32 reference.
    rel_l2 = float(jnp.linalg.norm(out - ref) / (jnp.linalg.norm(ref) + 1e-12))
    max_abs = float(jnp.max(jnp.abs(out - ref)))
    assert rel_l2 < 2.5e-2, (rel_l2, max_abs)
    assert jnp.allclose(out, ref, atol=2e-1, rtol=6e-2), (rel_l2, max_abs)

    print("KERNEL_OK")
</pallas_src>

<mosaic_0001>
module attributes {stable_mosaic.version = 11 : i64} {
  func.func @_radon_matmul_kernel(%arg0: i32, %arg1: i32, %arg2: memref<16x256xbf16, #tpu.memory_space<vmem>>, %arg3: memref<1x1x256x128xbf16, #tpu.memory_space<vmem>>, %arg4: memref<16x128xf32, #tpu.memory_space<vmem>>) attributes {dimension_semantics = [#tpu.dimension_semantics<parallel>, #tpu.dimension_semantics<arbitrary>], iteration_bounds = array<i64: 1, 1>, scalar_prefetch = 0 : i64, scratch_operands = 0 : i64, tpu.core_type = #tpu.core_type<tc>, window_params = [{transform_indices = @transform_0, window_bounds = array<i64: 16, 256>}, {transform_indices = @transform_1, window_bounds = array<i64: 1, 1, 256, 128>}, {transform_indices = @transform_2, window_bounds = array<i64: 16, 128>}]} {
    %c0_i32 = arith.constant 0 : i32
    %0 = arith.cmpi eq, %arg1, %c0_i32 : i32
    %1 = arith.extui %0 : i1 to i32
    %c0_i32_0 = arith.constant 0 : i32
    %2 = arith.cmpi ne, %1, %c0_i32_0 : i32
    scf.if %2 {
      %cst_10 = arith.constant 0.000000e+00 : f32
      %10 = vector.broadcast %cst_10 : f32 to vector<16x128xf32>
      %c0_11 = arith.constant 0 : index
      %c0_12 = arith.constant 0 : index
      %11 = vector.load %arg4[%c0_11, %c0_12] : memref<16x128xf32, #tpu.memory_space<vmem>>, vector<16x128xf32>
      tpu.vector_store %arg4[%c0_11, %c0_12], %10 {strides = array<i32>} : memref<16x128xf32, #tpu.memory_space<vmem>>, vector<16x128xf32>,
    } else {
    }
    %c0 = arith.constant 0 : index
    %c0_1 = arith.constant 0 : index
    %3 = vector.load %arg4[%c0, %c0_1] : memref<16x128xf32, #tpu.memory_space<vmem>>, vector<16x128xf32>
    %c0_2 = arith.constant 0 : index
    %c0_3 = arith.constant 0 : index
    %4 = vector.load %arg2[%c0_2, %c0_3] : memref<16x256xbf16, #tpu.memory_space<vmem>>, vector<16x256xbf16>
    %c0_4 = arith.constant 0 : index
    %c0_5 = arith.constant 0 : index
    %c0_6 = arith.constant 0 : index
    %c0_7 = arith.constant 0 : index
    %5 = vector.load %arg3[%c0_4, %c0_5, %c0_6, %c0_7] : memref<1x1x256x128xbf16, #tpu.memory_space<vmem>>, vector<1x1x256x128xbf16>
    %6 = vector.shape_cast %5 : vector<1x1x256x128xbf16> to vector<256x128xbf16>
    %cst = arith.constant dense<0.000000e+00> : vector<16x128xf32>
    %7 = tpu.matmul %4, %6, %cst {dimension_numbers = #tpu.dot_dimension_numbers<[1], [0], [0], [1], [0, 0, 1, 1], [], []>} : vector<16x256xbf16>, vector<256x128xbf16>, vector<16x128xf32> -> vector<16x128xf32>
    %8 = arith.addf %3, %7 : vector<16x128xf32>
    %c0_8 = arith.constant 0 : index
    %c0_9 = arith.constant 0 : index
    %9 = vector.load %arg4[%c0_8, %c0_9] : memref<16x128xf32, #tpu.memory_space<vmem>>, vector<16x128xf32>
    tpu.vector_store %arg4[%c0_8, %c0_9], %8 {strides = array<i32>} : memref<16x128xf32, #tpu.memory_space<vmem>>, vector<16x128xf32>,
    return
  }
  func.func @transform_0(%arg0: i32, %arg1: i32) -> (i32, i32) {
    %c0_i32 = arith.constant 0 : i32
    %c0_i32_0 = arith.constant 0 : i32
    return %c0_i32, %arg1 : i32, i32
  }
  func.func @transform_1(%arg0: i32, %arg1: i32) -> (i32, i32, i32, i32) {
    %c0_i32 = arith.constant 0 : i32
    %c0_i32_0 = arith.constant 0 : i32
    %c0_i32_1 = arith.constant 0 : i32
    return %arg1, %arg0, %c0_i32, %c0_i32_0 : i32, i32, i32, i32
  }
  func.func @transform_2(%arg0: i32, %arg1: i32) -> (i32, i32) {
    %c0_i32 = arith.constant 0 : i32
    %c0_i32_0 = arith.constant 0 : i32
    return %c0_i32, %arg0 : i32, i32
  }
}

</mosaic_0001>

<llo_original>
// kernel: forward.1
$region0: #{forward.1}
  #allocation0 [shape = 'u32[]', space=smem, size = 0x4, offset = 0x4, fixed_abs, tag = 'smem constant byte address 0x4 - core index']
  #allocation1 [shape = 'u32[72,128]{1,0:T(1,128)}', space=vmem, size = 0x9000, scoped, tag = 'internal scratch']
  %s0 = inlined_call_operand.vmem [shape: bf16[16,256], index: 0, kind: input, shape index: {}]
  %s1 = inlined_call_operand.vmem [shape: bf16[1,1,256,128], index: 1, kind: input, shape index: {}]
  %s2 = inlined_call_operand.vmem [shape: f32[16,128], index: 2, kind: output, shape index: {}]
  %s3 = sld [smem:[#allocation0]]
  $region22: #{forward.1} parent=0
    _
  %s5 = ssub.s32 1, %s3
  %s6 = scalar_select 0, %s5, %s3
  // Predicated region
  $region2: #{forward.1} parent=0 // pred_check
    _
  $region3: #{forward.1} parent=0 // pred_check_branch
    %8 = sbr.rel (0) target = $region5
  $region4: #{forward.1} parent=0 // pred_region
    _
  $region5: #{forward.1} parent=0 // pred_fallthru
    _
  // Predicated region
  $region6: #{forward.1} parent=0 // pred_check
    _
  $region7: #{forward.1} parent=0 // pred_check_branch
    %10 = sbr.rel (0) target = $region9
  $region8: #{forward.1} parent=0 // pred_region
    _
  $region9: #{forward.1} parent=0 // pred_fallthru
    _
  %p11 = scmp.eq.s32.totalorder 0, 0
  // Predicated region
  $region10: #{forward.1} parent=0 // pred_check
    %p12 = pneg %p11
  $region11: #{forward.1} parent=0 // pred_check_branch
    %14 = sbr.rel (%p12) target = $region13
  $region12: #{forward.1} parent=0 // pred_region
    %15 = vst [vmem:[%s2] sm:$0xff] 0.0
    %16 = vst [vmem:[%s2 + $0x8] sm:$0xff] 0.0
  $region13: #{forward.1} parent=0 // pred_fallthru
    _
  %v17 = vld [vmem:[%s2] sm:$0xff]
  %v18 = vld [vmem:[%s2 + $0x8] sm:$0xff]
  %v19 = vld [vmem:[%s0] sm:$0xff]
  %v20 = vld [vmem:[%s0 + $0x8] sm:$0xff]
  %v21 = vld [vmem:[%s1] sm:$0xf]
  %v22 = vld [vmem:[%s1 + $0x4] sm:$0xf]
  %v23 = vld [vmem:[%s1 + $0x8] sm:$0xf]
  %v24 = vld [vmem:[%s1 + $0xc] sm:$0xf]
  %v25 = vld [vmem:[%s1 + $0x10] sm:$0xf]
  %v26 = vld [vmem:[%s1 + $0x14] sm:$0xf]
  %v27 = vld [vmem:[%s1 + $0x18] sm:$0xf]
  %v28 = vld [vmem:[%s1 + $0x1c] sm:$0xf]
  %v29 = vld [vmem:[%s1 + $0x20] sm:$0xf]
  %v30 = vld [vmem:[%s1 + $0x24] sm:$0xf]
  %v31 = vld [vmem:[%s1 + $0x28] sm:$0xf]
  %v32 = vld [vmem:[%s1 + $0x2c] sm:$0xf]
  %v33 = vld [vmem:[%s1 + $0x30] sm:$0xf]
  %v34 = vld [vmem:[%s1 + $0x34] sm:$0xf]
  %v35 = vld [vmem:[%s1 + $0x38] sm:$0xf]
  %v36 = vld [vmem:[%s1 + $0x3c] sm:$0xf]
  %v37 = vld [vmem:[%s1 + $0x40] sm:$0xf]
  %v38 = vld [vmem:[%s1 + $0x44] sm:$0xf]
  %v39 = vld [vmem:[%s1 + $0x48] sm:$0xf]
  %v40 = vld [vmem:[%s1 + $0x4c] sm:$0xf]
  %v41 = vld [vmem:[%s1 + $0x50] sm:$0xf]
  %v42 = vld [vmem:[%s1 + $0x54] sm:$0xf]
  %v43 = vld [vmem:[%s1 + $0x58] sm:$0xf]
  %v44 = vld [vmem:[%s1 + $0x5c] sm:$0xf]
  %v45 = vld [vmem:[%s1 + $0x60] sm:$0xf]
  %v46 = vld [vmem:[%s1 + $0x64] sm:$0xf]
  %v47 = vld [vmem:[%s1 + $0x68] sm:$0xf]
  %v48 = vld [vmem:[%s1 + $0x6c] sm:$0xf]
  %v49 = vld [vmem:[%s1 + $0x70] sm:$0xf]
  %v50 = vld [vmem:[%s1 + $0x74] sm:$0xf]
  %v51 = vld [vmem:[%s1 + $0x78] sm:$0xf]
  %v52 = vld [vmem:[%s1 + $0x7c] sm:$0xf]
  %v55 = vunpack.c.l.b16 %v19
  %v56 = vunpack.c.h.b16 %v19
  %v57 = vunpack.c.l.b16 %v20
  %v58 = vunpack.c.h.b16 %v20
  %v59 = vpack.c.b16 %v57, %v55
  %v60 = vpack.c.b16 %v58, %v56
  %v95 = vunpack.c.l.b16 %v21
  %v96 = vunpack.c.l.b16 %v22
  %v97 = vunpack.c.l.b16 %v23
  %v98 = vunpack.c.l.b16 %v24
  %v99 = vunpack.c.l.b16 %v25
  %v100 = vunpack.c.l.b16 %v26
  %v101 = vunpack.c.l.b16 %v27
  %v102 = vunpack.c.l.b16 %v28
  %v103 = vunpack.c.l.b16 %v29
  %v104 = vunpack.c.l.b16 %v30
  %v105 = vunpack.c.l.b16 %v31
  %v106 = vunpack.c.l.b16 %v32
  %v107 = vunpack.c.l.b16 %v33
  %v108 = vunpack.c.l.b16 %v34
  %v109 = vunpack.c.l.b16 %v35
  %v110 = vunpack.c.l.b16 %v36
  %v111 = vunpack.c.l.b16 %v37
  %v112 = vunpack.c.l.b16 %v38
  %v113 = vunpack.c.l.b16 %v39
  %v114 = vunpack.c.l.b16 %v40
  %v115 = vunpack.c.l.b16 %v41
  %v116 = vunpack.c.l.b16 %v42
  %v117 = vunpack.c.l.b16 %v43
  %v118 = vunpack.c.l.b16 %v44
  %v119 = vunpack.c.l.b16 %v45
  %v120 = vunpack.c.l.b16 %v46
  %v121 = vunpack.c.l.b16 %v47
  %v122 = vunpack.c.l.b16 %v48
  %v123 = vunpack.c.l.b16 %v49
  %v124 = vunpack.c.l.b16 %v50
  %v125 = vunpack.c.l.b16 %v51
  %v126 = vunpack.c.l.b16 %v52
  %v127 = vpack.c.b16 %v96, %v95
  %v128 = vpack.c.b16 %v98, %v97
  %v129 = vpack.c.b16 %v100, %v99
  %v130 = vpack.c.b16 %v102, %v101
  %v131 = vpack.c.b16 %v104, %v103
  %v132 = vpack.c.b16 %v106, %v105
  %v133 = vpack.c.b16 %v108, %v107
  %v134 = vpack.c.b16 %v110, %v109
  %v135 = vpack.c.b16 %v112, %v111
  %v136 = vpack.c.b16 %v114, %v113
  %v137 = vpack.c.b16 %v116, %v115
  %v138 = vpack.c.b16 %v118, %v117
  %v139 = vpack.c.b16 %v120, %v119
  %v140 = vpack.c.b16 %v122, %v121
  %v141 = vpack.c.b16 %v124, %v123
  %v142 = vpack.c.b16 %v126, %v125
  %159 = vmatpush.bf16.msra.mxu0 %v134
  %160 = vmatpush.bf16.msra.mxu0 %v133
  %161 = vmatpush.bf16.msra.mxu0 %v132
  %162 = vmatpush.bf16.msra.mxu0 %v131
  %163 = vmatpush.bf16.msra.mxu0 %v130
  %164 = vmatpush.bf16.msra.mxu0 %v129
  %165 = vmatpush.bf16.msra.mxu0 %v128
  %166 = vmatpush.bf16.msra.mxu0 %v127
  %167 = vmatmul.bf16.gmra.mxu0 %v59
  %v168 = vpop.f32.mrf.mxu0
  %v169 = vadd.f32 0.0, %v168
  %v170 = vpop.f32.mrf.mxu0
  %v171 = vadd.f32 0.0, %v170
  %172 = vdwg.mxu0
  %173 = vmatpush.bf16.msra.mxu0 %v142
  %174 = vmatpush.bf16.msra.mxu0 %v141
  %175 = vmatpush.bf16.msra.mxu0 %v140
  %176 = vmatpush.bf16.msra.mxu0 %v139
  %177 = vmatpush.bf16.msra.mxu0 %v138
  %178 = vmatpush.bf16.msra.mxu0 %v137
  %179 = vmatpush.bf16.msra.mxu0 %v136
  %180 = vmatpush.bf16.msra.mxu0 %v135
  %181 = vmatmul.bf16.gmra.mxu0 %v60
  %v182 = vpop.f32.mrf.mxu0
  %v183 = vadd.f32 %v169, %v182
  %v184 = vpop.f32.mrf.mxu0
  %v185 = vadd.f32 %v171, %v184
  %186 = vdwg.mxu0
  %v187 = vadd.f32 %v17, %v183
  %v188 = vadd.f32 %v18, %v185
  %189 = vst [vmem:[%s2] sm:$0xff] %v187
  %190 = vst [vmem:[%s2 + $0x8] sm:$0xff] %v188
  // Predicated region
  $region14: #{forward.1} parent=0 // pred_check
    _
  $region15: #{forward.1} parent=0 // pred_check_branch
    %192 = sbr.rel (0) target = $region17
  $region16: #{forward.1} parent=0 // pred_region
    _
  $region17: #{forward.1} parent=0 // pred_fallthru
    _
  // Predicated region
  $region18: #{forward.1} parent=0 // pred_check
    _
  $region19: #{forward.1} parent=0 // pred_check_branch
    %194 = sbr.rel (0) target = $region21
  $region20: #{forward.1} parent=0 // pred_region
    _
  $region21: #{forward.1} parent=0 // pred_fallthru
    _

</llo_original>
